<compile_context>
chip_gen: v5e
topology: v5e:2x2
jax: 0.10.0
libtpu: 0.0.40
codegen_flags: <defaults>
</compile_context>

<pallas_src>
import math
import functools

import jax
import jax.numpy as jnp
from jax.experimental import pallas as pl
from jax.experimental.pallas import tpu as pltpu

NEG_MIN = float(jnp.finfo(jnp.float32).min)


# ------------------------------ tiling helpers ------------------------------

def _pick_tile(dim, target):
    """Largest divisor of `dim` that is <= target, preferring (8,128)-friendly
    sizes.  Never silently blows up to the full dimension unless no aligned
    divisor exists at all."""
    if dim <= target:
        return dim
    for align in (128, 8):
        t = (target // align) * align
        while t >= align:
            if dim % t == 0:
                return t
            t -= align
    return dim   # last resort (block == full dim is always legal)


def _vmem_capacity_bytes():
    try:
        return int(pltpu.get_tpu_info().vmem_capacity_bytes)
    except Exception:
        return 64 * 1024 * 1024      # conservative (v7x per-TC VMEM)


def _pick_tq(S, D, vmem_bytes):
    """Largest q-tile in {512, 256, 128} whose double-buffered attention working
    set fits comfortably in VMEM (v6e/v5e 128 MiB can take 512 for moderate S;
    v7x's 64 MiB forces 128-256 for long S)."""
    for cand in (512, 256, 128):
        tq = _pick_tile(S, cand)
        resident = 2 * (tq * S * 5          # scores f32 + hh int8 q-tiles
                        + 2 * S * D * 2     # full-S pre-rotated K + V (bf16)
                        + tq * D * 18)      # q/cos/sin f32 tiles + outputs
        if resident <= vmem_bytes // 2:
            return tq
    return _pick_tile(S, 128)


# ----------------------------- projection matmuls ---------------------------

def _matmul_acc_out_kernel(x_ref, w_ref, o_ref):
    """f32 output: accumulate directly into the revisited output block."""
    @pl.when(pl.program_id(2) == 0)
    def _():
        o_ref[...] = jnp.zeros_like(o_ref)
    o_ref[...] += jnp.dot(x_ref[...], w_ref[...],
                          preferred_element_type=jnp.float32)


def _matmul_acc_scratch_kernel(x_ref, w_ref, o_ref, acc_ref):
    """Narrow output dtype: f32 scratch accumulator, cast once on the last k step."""
    @pl.when(pl.program_id(2) == 0)
    def _():
        acc_ref[...] = jnp.zeros_like(acc_ref)
    acc_ref[...] += jnp.dot(x_ref[...], w_ref[...],
                            preferred_element_type=jnp.float32)

    @pl.when(pl.program_id(2) == pl.num_programs(2) - 1)
    def _():
        o_ref[...] = acc_ref[...].astype(o_ref.dtype)


def linear(x, w, *, out_dtype=jnp.float32, tm=512, tn=256, tk=512, vmem_limit=None):
    """y = x @ w with x: [M, K] bf16, w: [K, N] bf16 (nn.Linear weight pre-transposed)."""
    M, K = x.shape
    K2, N = w.shape
    assert K == K2
    tm, tn, tk = _pick_tile(M, tm), _pick_tile(N, tn), _pick_tile(K, tk)
    out_dtype = jnp.dtype(out_dtype)
    if out_dtype == jnp.float32:
        kernel, scratch = _matmul_acc_out_kernel, []
    else:
        kernel, scratch = _matmul_acc_scratch_kernel, [pltpu.VMEM((tm, tn), jnp.float32)]
    params = dict(dimension_semantics=("parallel", "parallel", "arbitrary"))
    if vmem_limit is not None:
        params["vmem_limit_bytes"] = int(vmem_limit)
    return pl.pallas_call(
        kernel,
        out_shape=jax.ShapeDtypeStruct((M, N), out_dtype),
        grid_spec=pltpu.PrefetchScalarGridSpec(
            num_scalar_prefetch=0,
            grid=(M // tm, N // tn, K // tk),
            in_specs=[pl.BlockSpec((tm, tk), lambda i, j, k: (i, k)),
                      pl.BlockSpec((tk, tn), lambda i, j, k: (k, j))],
            out_specs=pl.BlockSpec((tm, tn), lambda i, j, k: (i, j)),
            scratch_shapes=scratch),
        compiler_params=pltpu.CompilerParams(**params),
    )(x, w)


# ------------------------------ K pre-rotation ------------------------------

def _rope_kernel(x_ref, cos_ref, sin_ref, o_ref):
    x = x_ref[0, 0]                               # [ts, D] f32
    half = x.shape[-1] // 2
    # rotate_half with the sign folded into the pre-negated sin table.
    # TODO(synk): pltpu.roll(x, half, axis=-1) would push this onto the XLU slot.
    rot = jnp.concatenate([x[:, half:], x[:, :half]], axis=-1)
    o_ref[0, 0] = (x * cos_ref[...] + rot * sin_ref[...]).astype(o_ref.dtype)


def rope_rotate(x, cos, sin_signed, *, out_dtype=jnp.bfloat16, ts=512, vmem_limit=None):
    """Apply RoPE once per (b, h, s-tile).  x: [B, NH, S, D] f32 -> bf16."""
    B, NH, S, D = x.shape
    ts = _pick_tile(S, ts)
    params = dict(dimension_semantics=("parallel", "parallel", "parallel"))
    if vmem_limit is not None:
        params["vmem_limit_bytes"] = int(vmem_limit)
    return pl.pallas_call(
        _rope_kernel,
        out_shape=jax.ShapeDtypeStruct((B, NH, S, D), out_dtype),
        grid=(B, NH, S // ts),
        in_specs=[
            pl.BlockSpec((1, 1, ts, D), lambda b, h, si: (b, h, si, 0)),
            pl.BlockSpec((ts, D), lambda b, h, si: (si, 0)),
            pl.BlockSpec((ts, D), lambda b, h, si: (si, 0)),
        ],
        out_specs=pl.BlockSpec((1, 1, ts, D), lambda b, h, si: (b, h, si, 0)),
        compiler_params=pltpu.CompilerParams(**params),
    )(x, cos, sin_signed)


# -------------------------------- QK^T scores -------------------------------

def _scores_kernel(scale, tq, q_ref, krot_ref, cos_ref, sin_ref, o_ref):
    qi = pl.program_id(2)
    q = q_ref[0, 0]                               # [tq, D] f32
    half = q.shape[-1] // 2
    rot = jnp.concatenate([q[:, half:], q[:, :half]], axis=-1)
    q_rot = (q * cos_ref[...] + rot * sin_ref[...]).astype(jnp.bfloat16)
    s = jax.lax.dot_general(q_rot, krot_ref[0, 0],
                            (((1,), (1,)), ((), ())),
                            preferred_element_type=jnp.float32)
    s = s * scale
    # Additive causal mask + clamp reconstructed in-kernel (no [tq, S] HBM stream).
    # TODO(synk): general padded masks would need per-row valid lengths via scalar prefetch.
    row = qi * tq + jax.lax.broadcasted_iota(jnp.int32, s.shape, 0)
    col = jax.lax.broadcasted_iota(jnp.int32, s.shape, 1)
    o_ref[0, 0] = jnp.where(col <= row, jnp.maximum(s, NEG_MIN), NEG_MIN)


def attn_scores(q, k_rot_bf16, cos, sin_signed, *, tq, vmem_limit=None):
    """q: [B,NH,S,D] f32; k_rot_bf16: [B,NH,S,D] bf16 (pre-rotated); cos/sin: [S,D]."""
    B, NH, S, D = q.shape
    scale = 1.0 / math.sqrt(D)
    kernel = functools.partial(_scores_kernel, scale, tq)
    params = dict(dimension_semantics=("parallel", "parallel", "parallel"))
    if vmem_limit is not None:
        params["vmem_limit_bytes"] = int(vmem_limit)
    return pl.pallas_call(
        kernel,
        out_shape=jax.ShapeDtypeStruct((B, NH, S, S), jnp.float32),
        grid=(B, NH, S // tq),
        in_specs=[
            pl.BlockSpec((1, 1, tq, D), lambda b, h, qi: (b, h, qi, 0)),
            pl.BlockSpec((1, 1, S, D), lambda b, h, qi: (b, h, 0, 0)),   # pre-rotated K (bf16)
            pl.BlockSpec((tq, D), lambda b, h, qi: (qi, 0)),             # cos for q rows
            pl.BlockSpec((tq, D), lambda b, h, qi: (qi, 0)),             # signed sin for q rows
        ],
        out_specs=pl.BlockSpec((1, 1, tq, S), lambda b, h, qi: (b, h, qi, 0)),
        compiler_params=pltpu.CompilerParams(**params),
    )(q, k_rot_bf16, cos, sin_signed)


# --------------------------- masked softmax + A @ V -------------------------

def _softmax_av_kernel(recent_budget, tq, w_ref, hh_ref, v_ref, fill_ref, o_ref):
    qi = pl.program_id(2)
    w = w_ref[0, 0]                               # [tq, S] f32 logits
    S = w.shape[-1]
    # recent + causal components computed analytically (no HBM traffic for them);
    # only the data-dependent heavy-hitter bits arrive as an int8 block.
    row = qi * tq + jax.lax.broadcasted_iota(jnp.int32, (tq, S), 0)
    col = jax.lax.broadcasted_iota(jnp.int32, (tq, S), 1)
    hh = hh_ref[0, 0].astype(jnp.int32) > 0
    keep = (hh | (col >= row - recent_budget)) & (col <= row)
    w = jnp.where(keep, w, fill_ref[0, 0])        # fill = min(attention_mask) from SMEM
    w = w - jnp.max(w, axis=-1, keepdims=True)
    e = jnp.exp(w)
    p = e * pl.reciprocal(jnp.sum(e, axis=-1, keepdims=True), approx=True)
    o_ref[0, 0] = jnp.dot(p.astype(jnp.bfloat16), v_ref[0, 0],
                          preferred_element_type=jnp.float32).astype(o_ref.dtype)


def masked_softmax_av(scores, hh_mask_i8, v_bf16, fill, *, recent_budget, tq,
                      vmem_limit=None):
    """scores: [B,NH,S,S] f32; hh_mask_i8: [B,NH,S,S] int8; v_bf16: [B,NH,S,D] bf16."""
    B, NH, S, _ = scores.shape
    D = v_bf16.shape[-1]
    kernel = functools.partial(_softmax_av_kernel, recent_budget, tq)
    params = dict(dimension_semantics=("parallel", "parallel", "parallel"))
    if vmem_limit is not None:
        params["vmem_limit_bytes"] = int(vmem_limit)
    return pl.pallas_call(
        kernel,
        out_shape=jax.ShapeDtypeStruct((B, NH, S, D), jnp.bfloat16),
        grid=(B, NH, S // tq),
        in_specs=[
            pl.BlockSpec((1, 1, tq, S), lambda b, h, qi: (b, h, qi, 0)),
            pl.BlockSpec((1, 1, tq, S), lambda b, h, qi: (b, h, qi, 0)),
            pl.BlockSpec((1, 1, S, D), lambda b, h, qi: (b, h, 0, 0)),
            pl.BlockSpec((1, 1), lambda b, h, qi: (0, 0),
                         memory_space=pltpu.MemorySpace.SMEM),
        ],
        out_specs=pl.BlockSpec((1, 1, tq, D), lambda b, h, qi: (b, h, qi, 0)),
        compiler_params=pltpu.CompilerParams(**params),
    )(scores, hh_mask_i8, v_bf16, fill)


# ------------------- heavy-hitter mask (plain JAX glue) ----------------------

def local_heavy_hitter_mask_jax(attn_weights, heavy_budget):
    """Faithful port of local_heavy_hitter_mask (padding_length = 0)."""
    B, H, S, _ = attn_weights.shape
    tmp = jax.nn.softmax(attn_weights.astype(jnp.float32), axis=-1)
    acc = jnp.sum(tmp[:, :, :heavy_budget, :], axis=-2)                # [B,H,S]
    col = jnp.arange(S)
    acc = jnp.where(col[None, None, :] >= heavy_budget, 0.0, acc)

    mask0 = (col[:, None] < heavy_budget) & (col[None, :] < heavy_budget)
    mask_bottom = jnp.broadcast_to(mask0[None, None], (B, H, S, S))

    def body(t, carry):
        mask_bottom, acc = carry
        w_t = jax.lax.dynamic_index_in_dim(attn_weights, t, axis=2, keepdims=False)
        p_t = jax.nn.softmax(w_t.astype(jnp.float32), axis=-1)         # [B,H,S]
        _, topk_idx = jax.lax.top_k(acc, heavy_budget - 1)             # [B,H,k]
        scattered = jnp.sum(jax.nn.one_hot(topk_idx, S, dtype=jnp.float32), axis=-2) > 0
        mb_idx = scattered | (col[None, None, :] == t)                 # [B,H,S]
        mask_bottom = jnp.where((col == t)[None, None, :, None],
                                mb_idx[:, :, None, :], mask_bottom)
        acc = (acc + p_t) * mb_idx.astype(acc.dtype)
        return (mask_bottom, acc)

    mask_bottom, _ = jax.lax.fori_loop(heavy_budget, S, body, (mask_bottom, acc))
    return mask_bottom


# ------------------------------- forward -------------------------------------

def llama_attention_heavy_hitter_forward(hidden, wqk_bf16, wv_bf16, wo_bf16, attn_mask,
                                         cos, sin, num_heads,
                                         heavy_ratio, recent_ratio):
    B, S, H = hidden.shape
    D = H // num_heads
    vmem_cap = _vmem_capacity_bytes()
    vmem_limit = (3 * vmem_cap) // 4
    x2d = hidden.reshape(B * S, H).astype(jnp.bfloat16)

    # Fused Q|K projection (f32 for RoPE fidelity) + separate V projection (bf16,
    # no f32 round-trip).
    qk = linear(x2d, wqk_bf16, out_dtype=jnp.float32, vmem_limit=vmem_limit)   # [B*S, 2H]
    v2d = linear(x2d, wv_bf16, out_dtype=jnp.bfloat16, vmem_limit=vmem_limit)  # [B*S, H] bf16

    def heads(t):
        return t.reshape(B, S, num_heads, D).transpose(0, 2, 1, 3)             # [B,NH,S,D]

    q = heads(qk[:, :H])                        # f32
    k = heads(qk[:, H:])                        # f32
    v = heads(v2d)                              # bf16

    # rotate_half sign folded into a pre-negated sin table (first half negated).
    half = D // 2
    sign = jnp.concatenate([-jnp.ones((half,), jnp.float32),
                            jnp.ones((half,), jnp.float32)])
    sin_signed = sin * sign[None, :]

    # K RoPE once per (b, h, s-tile); scores kernel consumes pre-rotated bf16 K.
    k_rot = rope_rotate(k, cos, sin_signed, out_dtype=jnp.bfloat16,
                        vmem_limit=vmem_limit)

    tq = _pick_tq(S, D, vmem_cap)
    scores = attn_scores(q, k_rot, cos, sin_signed, tq=tq,
                         vmem_limit=vmem_limit)                                 # [B,NH,S,S] f32

    heavy_budget = int(heavy_ratio * S)
    recent_budget = int(recent_ratio * S)
    if heavy_budget > 0:
        hh_mask = local_heavy_hitter_mask_jax(scores, heavy_budget)
    else:
        hh_mask = jnp.zeros(scores.shape, dtype=bool)

    fill = jnp.min(attn_mask).reshape(1, 1).astype(jnp.float32)     # torch.min(attention_mask)
    attn_out = masked_softmax_av(scores, hh_mask.astype(jnp.int8), v, fill,
                                 recent_budget=recent_budget, tq=tq,
                                 vmem_limit=vmem_limit)                          # [B,NH,S,D] bf16

    attn_out = attn_out.transpose(0, 2, 1, 3).reshape(B * S, H)                  # bf16
    out = linear(attn_out, wo_bf16, out_dtype=jnp.float32,
                 vmem_limit=vmem_limit).reshape(B, S, H)
    return out, scores, hh_mask


# ------------------------- pure-JAX reference (check) ------------------------

def reference_with_mask(hidden, wq, wk, wv, wo, attn_mask, cos, sin, num_heads, mask_bottom):
    """Mirrors the kernel's bf16-at-MXU / f32-accumulate numerics."""
    B, S, H = hidden.shape
    D = H // num_heads
    x2d = hidden.reshape(B * S, H).astype(jnp.bfloat16)

    def proj(w):
        y = jnp.dot(x2d, w.astype(jnp.bfloat16), preferred_element_type=jnp.float32)
        return y.reshape(B, S, num_heads, D).transpose(0, 2, 1, 3)

    q, k, v = proj(wq), proj(wk), proj(wv)
    half = D // 2

    def rope(x):
        rot = jnp.concatenate([-x[..., half:], x[..., :half]], axis=-1)
        return x * cos + rot * sin

    q, k = rope(q), rope(k)
    scores = jnp.einsum('bhqd,bhkd->bhqk',
                        q.astype(jnp.bfloat16), k.astype(jnp.bfloat16),
                        preferred_element_type=jnp.float32) * (1.0 / math.sqrt(D))
    scores = scores + attn_mask
    scores = jnp.maximum(scores, NEG_MIN)
    fill = jnp.min(attn_mask)
    scores = jnp.where(mask_bottom, scores, fill)
    scores = scores - jnp.max(scores, axis=-1, keepdims=True)
    e = jnp.exp(scores)
    p = e / jnp.sum(e, axis=-1, keepdims=True)
    o = jnp.einsum('bhqk,bhkd->bhqd',
                   p.astype(jnp.bfloat16), v.astype(jnp.bfloat16),
                   preferred_element_type=jnp.float32)
    o = o.transpose(0, 2, 1, 3).reshape(B * S, H)
    return jnp.dot(o.astype(jnp.bfloat16), wo.astype(jnp.bfloat16),
                   preferred_element_type=jnp.float32).reshape(B, S, H)


# ---------------------------------- main --------------------------------------

if __name__ == "__main__":
    B, S, H, NH = 2, 8, 32, 2
    D = H // NH
    heavy_ratio, recent_ratio = 0.5, 0.25    # heavy_budget=4, recent_budget=2

    key = jax.random.PRNGKey(0)
    k0, k1, k2, k3, k4 = jax.random.split(key, 5)
    hidden = jax.random.normal(k0, (B, S, H), dtype=jnp.float32)
    # nn.Linear weights are [out, in]; stored pre-transposed as [in, out].
    wq = 0.05 * jax.random.normal(k1, (H, H), dtype=jnp.float32)
    wk = 0.05 * jax.random.normal(k2, (H, H), dtype=jnp.float32)
    wv = 0.05 * jax.random.normal(k3, (H, H), dtype=jnp.float32)
    wo = 0.05 * jax.random.normal(k4, (H, H), dtype=jnp.float32)

    # Weight preprocessing hoisted out of the forward (parameter-load time).
    wqk_bf16 = jnp.concatenate([wq, wk], axis=1).astype(jnp.bfloat16)   # [H, 2H]
    wv_bf16 = wv.astype(jnp.bfloat16)
    wo_bf16 = wo.astype(jnp.bfloat16)

    # LlamaRotaryEmbedding tables (position_ids = arange(S))
    inv_freq = 1.0 / (10000.0 ** (jnp.arange(0, D, 2, dtype=jnp.float32) / D))
    t = jnp.arange(S, dtype=jnp.float32)
    freqs = jnp.outer(t, inv_freq)
    emb = jnp.concatenate([freqs, freqs], axis=-1)
    cos, sin = jnp.cos(emb), jnp.sin(emb)

    # standard additive causal attention mask [B, 1, S, S]
    idx = jnp.arange(S)
    causal_add = jnp.where(idx[None, :] > idx[:, None], NEG_MIN, 0.0).astype(jnp.float32)
    attn_mask = jnp.broadcast_to(causal_add[None, None], (B, 1, S, S))

    out, scores, hh_mask = llama_attention_heavy_hitter_forward(
        hidden, wqk_bf16, wv_bf16, wo_bf16, attn_mask, cos, sin, NH,
        heavy_ratio, recent_ratio)
    out = jax.block_until_ready(out)

    # Reconstruct the combined H2O keep-mask (heavy | recent, then causal) for the reference.
    recent_budget = int(recent_ratio * S)
    col = jnp.arange(S)
    recent = col[None, :] >= (col[:, None] - recent_budget)            # triu(diag=-recent)
    causal_keep = col[None, :] <= col[:, None]                         # tril(diag=0)
    mask_bottom = (hh_mask | recent[None, None]) & causal_keep[None, None]

    ref_out = reference_with_mask(hidden, wq, wk, wv, wo, attn_mask, cos, sin, NH, mask_bottom)
    assert out.shape == (B, S, H)
    assert bool(jnp.all(jnp.isfinite(out)))
    max_err = float(jnp.max(jnp.abs(out - ref_out)))
    assert max_err < 1e-2, f"mismatch vs reference, max_err={max_err}"

    print("KERNEL_OK")
</pallas_src>

<mosaic_0001>
module attributes {stable_mosaic.version = 11 : i64} {
  func.func @_matmul_acc_out_kernel(%arg0: i32, %arg1: i32, %arg2: i32, %arg3: memref<16x32xbf16, #tpu.memory_space<vmem>>, %arg4: memref<32x64xbf16, #tpu.memory_space<vmem>>, %arg5: memref<16x64xf32, #tpu.memory_space<vmem>>) attributes {dimension_semantics = [#tpu.dimension_semantics<parallel>, #tpu.dimension_semantics<parallel>, #tpu.dimension_semantics<arbitrary>], iteration_bounds = array<i64: 1, 1, 1>, scalar_prefetch = 0 : i64, scratch_operands = 0 : i64, tpu.core_type = #tpu.core_type<tc>, window_params = [{transform_indices = @transform_0, window_bounds = array<i64: 16, 32>}, {transform_indices = @transform_1, window_bounds = array<i64: 32, 64>}, {transform_indices = @transform_2, window_bounds = array<i64: 16, 64>}]} {
    %c0_i32 = arith.constant 0 : i32
    %0 = arith.cmpi eq, %arg2, %c0_i32 : i32
    %1 = arith.extui %0 : i1 to i32
    %c0_i32_0 = arith.constant 0 : i32
    %2 = arith.cmpi ne, %1, %c0_i32_0 : i32
    scf.if %2 {
      %cst_8 = arith.constant 0.000000e+00 : f32
      %9 = vector.broadcast %cst_8 : f32 to vector<16x64xf32>
      %c0_9 = arith.constant 0 : index
      %c0_10 = arith.constant 0 : index
      %10 = vector.load %arg5[%c0_9, %c0_10] : memref<16x64xf32, #tpu.memory_space<vmem>>, vector<16x64xf32>
      tpu.vector_store %arg5[%c0_9, %c0_10], %9 {strides = array<i32>} : memref<16x64xf32, #tpu.memory_space<vmem>>, vector<16x64xf32>,
    } else {
    }
    %c0 = arith.constant 0 : index
    %c0_1 = arith.constant 0 : index
    %3 = vector.load %arg5[%c0, %c0_1] : memref<16x64xf32, #tpu.memory_space<vmem>>, vector<16x64xf32>
    %c0_2 = arith.constant 0 : index
    %c0_3 = arith.constant 0 : index
    %4 = vector.load %arg3[%c0_2, %c0_3] : memref<16x32xbf16, #tpu.memory_space<vmem>>, vector<16x32xbf16>
    %c0_4 = arith.constant 0 : index
    %c0_5 = arith.constant 0 : index
    %5 = vector.load %arg4[%c0_4, %c0_5] : memref<32x64xbf16, #tpu.memory_space<vmem>>, vector<32x64xbf16>
    %cst = arith.constant dense<0.000000e+00> : vector<16x64xf32>
    %6 = tpu.matmul %4, %5, %cst {dimension_numbers = #tpu.dot_dimension_numbers<[1], [0], [0], [1], [0, 0, 1, 1], [], []>} : vector<16x32xbf16>, vector<32x64xbf16>, vector<16x64xf32> -> vector<16x64xf32>
    %7 = arith.addf %3, %6 : vector<16x64xf32>
    %c0_6 = arith.constant 0 : index
    %c0_7 = arith.constant 0 : index
    %8 = vector.load %arg5[%c0_6, %c0_7] : memref<16x64xf32, #tpu.memory_space<vmem>>, vector<16x64xf32>
    tpu.vector_store %arg5[%c0_6, %c0_7], %7 {strides = array<i32>} : memref<16x64xf32, #tpu.memory_space<vmem>>, vector<16x64xf32>,
    return
  }
  func.func @transform_0(%arg0: i32, %arg1: i32, %arg2: i32) -> (i32, i32) {
    %c0_i32 = arith.constant 0 : i32
    return %arg0, %arg2 : i32, i32
  }
  func.func @transform_1(%arg0: i32, %arg1: i32, %arg2: i32) -> (i32, i32) {
    %c0_i32 = arith.constant 0 : i32
    return %arg2, %arg1 : i32, i32
  }
  func.func @transform_2(%arg0: i32, %arg1: i32, %arg2: i32) -> (i32, i32) {
    %c0_i32 = arith.constant 0 : i32
    return %arg0, %arg1 : i32, i32
  }
}

</mosaic_0001>

<llo_original>
// kernel: tpu_custom_call.1
$region0: #{tpu_custom_call.1}
  #allocation0 [shape = 'u32[]', space=smem, size = 0x4, offset = 0x4, fixed_abs, tag = 'smem constant byte address 0x4 - core index']
  #allocation1 [shape = 'u32[72,128]{1,0:T(1,128)}', space=vmem, size = 0x9000, scoped, tag = 'internal scratch']
  %s0 = inlined_call_operand.hbm [shape: bf16[16,32], index: 0, kind: input, shape index: {}]
  %s1 = inlined_call_operand.hbm [shape: bf16[32,64], index: 1, kind: input, shape index: {}]
  %s2 = inlined_call_operand.hbm [shape: f32[16,64], index: 2, kind: output, shape index: {}]
  %s3 = sld [smem:[#allocation0]]
  $region30: #{tpu_custom_call.1} parent=0
    _
  %s5 = ssub.s32 1, %s3
  %s6 = scalar_select 0, %s5, %s3
  $region1: #{tpu_custom_call.1} parent=0
    #allocation2 [shape = 'u8[4096]{0}', space=vmem, size = 0x1000, scoped, tag = 'input window, operand 0, single buffered']
    #allocation3 [shape = 's32[1]{0}', space=sflag, size = 0x4, scoped, tag = 'scoped memory for tpu_custom_call.1']
    #allocation4 [shape = 's32[1]{0}', space=sflag, size = 0x4, scoped, tag = 'scoped memory for tpu_custom_call.1']
    #allocation5 [shape = 'u8[8192]{0}', space=vmem, size = 0x2000, scoped, tag = 'input window, operand 1, single buffered']
    #allocation6 [shape = 's32[1]{0}', space=sflag, size = 0x4, scoped, tag = 'scoped memory for tpu_custom_call.1']
    #allocation7 [shape = 'u8[8192]{0}', space=vmem, size = 0x2000, scoped, tag = 'output window, operand 0, single buffered']
    %7 = vsyncpa [#allocation3], 0
    %8 = vsyncpa [#allocation6], 0
    %9 = vsyncpa [#allocation4], 0
    // Predicated region
    $region2: #{tpu_custom_call.1} parent=1 // pred_check
      _
    $region3: #{tpu_custom_call.1} parent=1 // pred_check_branch
      %11 = sbr.rel (0) target = $region5
    $region4: #{tpu_custom_call.1} parent=1 // pred_region
      %13 = vsyncadd [#allocation3], 0
      %s14 = sshll.u32 %s0, 4
      %s15 = int_to_ptr.hbm [resolvable:$true] %s14
      %s16 = sshll.u32 [#allocation2], 4
      %s17 = int_to_ptr.vmem [resolvable:$true] %s16
      %22 = dma.hbm_to_vmem [thread:$0]  %s15, 128, %s17, [#allocation3], 64, 64, 4
    $region5: #{tpu_custom_call.1} parent=1 // pred_fallthru
      _
    // Predicated region
    $region6: #{tpu_custom_call.1} parent=1 // pred_check
      _
    $region7: #{tpu_custom_call.1} parent=1 // pred_check_branch
      %24 = sbr.rel (0) target = $region9
    $region8: #{tpu_custom_call.1} parent=1 // pred_region
      %26 = vsyncadd [#allocation6], 0
      %s27 = sshll.u32 %s1, 4
      %s28 = int_to_ptr.hbm [resolvable:$true] %s27
      %s29 = sshll.u32 [#allocation5], 4
      %s30 = int_to_ptr.vmem [resolvable:$true] %s29
      %35 = dma.hbm_to_vmem [thread:$0]  %s28, 256, %s30, [#allocation6], 64, 64, 4
    $region9: #{tpu_custom_call.1} parent=1 // pred_fallthru
      _
    // Predicated region
    $region10: #{tpu_custom_call.1} parent=1 // pred_check
      _
    $region11: #{tpu_custom_call.1} parent=1 // pred_check_branch
      %37 = sbr.rel (0) target = $region13
    $region12: #{tpu_custom_call.1} parent=1 // pred_region
      %39 = dma.done [#allocation3], 128
    $region13: #{tpu_custom_call.1} parent=1 // pred_fallthru
      _
    // Predicated region
    $region14: #{tpu_custom_call.1} parent=1 // pred_check
      _
    $region15: #{tpu_custom_call.1} parent=1 // pred_check_branch
      %41 = sbr.rel (0) target = $region17
    $region16: #{tpu_custom_call.1} parent=1 // pred_region
      %43 = dma.done [#allocation6], 256
    $region17: #{tpu_custom_call.1} parent=1 // pred_fallthru
      _
    %p45 = scmp.eq.s32.totalorder 0, 0
    // Predicated region
    $region18: #{tpu_custom_call.1} parent=1 // pred_check
      %p46 = pneg %p45
    $region19: #{tpu_custom_call.1} parent=1 // pred_check_branch
      %48 = sbr.rel (%p46) target = $region21
    $region20: #{tpu_custom_call.1} parent=1 // pred_region
      %vm49 = vcmask 523264
      %50 = vst.msk [vmem:[#allocation7] sm:$0xff] %vm49, 0.0
      %51 = vst.msk [vmem:[#allocation7 + $0x8] sm:$0xff] %vm49, 0.0
    $region21: #{tpu_custom_call.1} parent=1 // pred_fallthru
      _
    %v52 = vld [vmem:[#allocation7] sm:$0xff]
    %v53 = vld [vmem:[#allocation7 + $0x8] sm:$0xff]
    %v54 = vld [vmem:[#allocation2] sm:$0xf]
    %v55 = vld [vmem:[#allocation2 + $0x4] sm:$0xf]
    %v56 = vld [vmem:[#allocation5] sm:$0xf]
    %v57 = vld [vmem:[#allocation5 + $0x4] sm:$0xf]
    %v58 = vld [vmem:[#allocation5 + $0x8] sm:$0xf]
    %v59 = vld [vmem:[#allocation5 + $0xc] sm:$0xf]
    %v62 = vunpack.c.l.b16 %v54
    %v63 = vunpack.c.l.b16 %v55
    %v64 = vpack.c.b16 %v63, %v62
    %v69 = vunpack.c.l.b16 %v56
    %v70 = vunpack.c.l.b16 %v57
    %v71 = vunpack.c.l.b16 %v58
    %v72 = vunpack.c.l.b16 %v59
    %v73 = vpack.c.b16 %v70, %v69
    %v74 = vpack.c.b16 %v72, %v71
    %vm77 = vcmask 261120
    %v79 = vsel %vm77, %v64, 0
    %81 = vmatpush.bf16.msra.mxu0 0
    %82 = vmatpush.bf16.msra.mxu0 0
    %83 = vmatpush.bf16.msra.mxu0 0
    %84 = vmatpush.bf16.msra.mxu0 0
    %85 = vmatpush.bf16.msra.mxu0 0
    %86 = vmatpush.bf16.msra.mxu0 0
    %87 = vmatpush.bf16.msra.mxu0 %v74
    %88 = vmatpush.bf16.msra.mxu0 %v73
    %89 = vmatmul.bf16.gmra.mxu0 %v79
    %v90 = vpop.f32.mrf.mxu0
    %v91 = vadd.f32 0.0, %v90
    %v92 = vpop.f32.mrf.mxu0
    %v93 = vadd.f32 0.0, %v92
    %94 = vdwg.mxu0
    %v95 = vadd.f32 %v52, %v91
    %v96 = vadd.f32 %v53, %v93
    %vm97 = vcmask 523264
    %98 = vst.msk [vmem:[#allocation7] sm:$0xff] %vm97, %v95
    %99 = vst.msk [vmem:[#allocation7 + $0x8] sm:$0xff] %vm97, %v96
    // Predicated region
    $region22: #{tpu_custom_call.1} parent=1 // pred_check
      _
    $region23: #{tpu_custom_call.1} parent=1 // pred_check_branch
      %101 = sbr.rel (0) target = $region25
    $region24: #{tpu_custom_call.1} parent=1 // pred_region
      %103 = vsyncadd [#allocation4], 0
      %s104 = sshll.u32 [#allocation7], 4
      %s105 = int_to_ptr.vmem [resolvable:$true] %s104
      %s106 = sshll.u32 %s2, 4
      %s107 = int_to_ptr.hbm [resolvable:$true] %s106
      %112 = dma.vmem_to_hbm [thread:$0]  %s105, 256, %s107, [#allocation4], 128, 128, 8
    $region25: #{tpu_custom_call.1} parent=1 // pred_fallthru
      _
    // Predicated region
    $region26: #{tpu_custom_call.1} parent=1 // pred_check
      _
    $region27: #{tpu_custom_call.1} parent=1 // pred_check_branch
      %114 = sbr.rel (0) target = $region29
    $region28: #{tpu_custom_call.1} parent=1 // pred_region
      %116 = dma.done [#allocation4], 256
    $region29: #{tpu_custom_call.1} parent=1 // pred_fallthru
      _
    %117 = vsyncpa [#allocation3], 1
    %118 = vsyncpa [#allocation6], 1
    %119 = vsyncpa [#allocation4], 1

</llo_original>
